<compile_context>
chip_gen: v5e
topology: v5e:2x2
jax: 0.10.0
libtpu: 0.0.40
codegen_flags: <defaults>
</compile_context>

<pallas_src>
import jax
import jax.numpy as jnp
from jax import lax
from jax.experimental import pallas as pl
from jax.experimental.pallas import tpu as pltpu


def _round_up(x, mult):
    return ((x + mult - 1) // mult) * mult


def _satnet_mix_body(max_iter, k, Bt, use_roll,
                     nfree_ref, fidx_ref,
                     vinit_ref, gate_ref, s_ref, st_ref, snorm_ref,
                     pseg_ref, rsel_ref, out_ref, V, Om):
    """One group of Bt interleaved lane-packed samples per grid step.

    nfree_ref : SMEM (G,)         number of free (union) variables per group
    fidx_ref  : SMEM (G, N_pad)   compacted free-variable indices per group
    vinit_ref : VMEM (N_pad, L)   initial embeddings, L = Bt*k, lane = l*Bt+b
    gate_ref  : VMEM (N_pad, L)   1.0 where (sample, var) is free, else 0.0
    s_ref     : VMEM (N_pad, m)   clause matrix S (zero rows for padded vars)
    st_ref    : VMEM (m, N_pad)   S transposed
    snorm_ref : VMEM (N_pad, 1)   ||S[i]||^2 (hoisted clause norms)
    pseg_ref  : VMEM (L, L)       segment-sum fallback (only if k not 2^j)
    rsel_ref  : VMEM (L, Ot)      selector -> lane-dense (N_pad, Ot) output
    out_ref   : VMEM (N_pad, Ot)  cos(pi*p) = -v_i . v_truth (cols 0..Bt-1)
    V, Om     : VMEM scratch (N_pad, L), (m, L)
    """
    grp = pl.program_id(0)
    n_free = nfree_ref[grp]
    n_pad = st_ref.shape[1]

    V[...] = vinit_ref[...]
    # hoisted: variable-id iota along lanes, used for the one-hot column pick
    var_ids = lax.broadcasted_iota(jnp.int32, (1, n_pad), 1)

    @pl.loop(0, max_iter)
    def _sweep(t):
        # Refresh Omega = S^T V once per sweep to bound rank-1 FP drift.
        Om[...] = jnp.dot(st_ref[...], V[...],
                          preferred_element_type=jnp.float32)

        # Gauss-Seidel only over the compacted per-group free-variable list.
        @pl.loop(0, n_free)
        def _update(j):
            i = fidx_ref[grp, j]
            s_row = s_ref[pl.ds(i, 1), :]            # (1, m)
            v_old = V[pl.ds(i, 1), :]                # (1, L)  Bt samples
            gate = gate_ref[pl.ds(i, 1), :]          # (1, L)
            sn = snorm_ref[pl.ds(i, 1), :]           # (1, 1)  ||s_i||^2
            # ---- dependence chain: g -> nrm -> v_new -> delta ------------
            g = jnp.dot(s_row, Om[...], preferred_element_type=jnp.float32)
            g = g - sn * v_old
            gg = g * g
            if use_roll:
                # per-sample sum over the k lanes of its residue class
                # (lane = l*Bt + b): log2(k) roll-and-adds on the XLU;
                # direction-agnostic because the class is cyclic of order k.
                nrm = gg
                for step in range(max(k.bit_length() - 1, 0)):
                    nrm = nrm + pltpu.roll(nrm, shift=Bt * (1 << step), axis=1)
            else:
                nrm = jnp.dot(gg, pseg_ref[...],
                              preferred_element_type=jnp.float32)
            v_new = -g * lax.rsqrt(jnp.maximum(nrm, 1e-12))
            v_new = jnp.where(nrm > 1e-12, v_new, v_old)   # skip degenerate g
            delta = gate * (v_new - v_old)                 # frozen lanes -> 0
            V[pl.ds(i, 1), :] = v_old + delta
            # ---- off the dependence chain: rank-1 Omega update -----------
            # s_i as an (m, 1) column via a one-hot contraction on the MXU
            # (replaces the masked (m, N_pad) multiply-reduce on the VALU).
            onehot = (var_ids == i).astype(jnp.float32)    # (1, N_pad)
            s_col = lax.dot_general(
                st_ref[...], onehot, (((1,), (1,)), ((), ())),
                preferred_element_type=jnp.float32)        # (m, 1)
            Om[...] = Om[...] + s_col * delta              # VPU broadcast FMA

    # cos(pi*p_i) = -v_i . v_truth for every variable and packed sample,
    # emitted as a lane-dense (N_pad, Ot) block.
    vw = V[...] * V[0:1, :]
    out_ref[...] = -jnp.dot(vw, rsel_ref[...], preferred_element_type=jnp.float32)


def _make_kernel(max_iter, k, Bt, use_roll):
    if use_roll:
        def kernel(nfree_ref, fidx_ref, vinit_ref, gate_ref, s_ref, st_ref,
                   snorm_ref, rsel_ref, out_ref, V, Om):
            _satnet_mix_body(max_iter, k, Bt, True, nfree_ref, fidx_ref,
                             vinit_ref, gate_ref, s_ref, st_ref, snorm_ref,
                             None, rsel_ref, out_ref, V, Om)
        return kernel

    def kernel(nfree_ref, fidx_ref, vinit_ref, gate_ref, s_ref, st_ref,
               snorm_ref, pseg_ref, rsel_ref, out_ref, V, Om):
        _satnet_mix_body(max_iter, k, Bt, False, nfree_ref, fidx_ref,
                         vinit_ref, gate_ref, s_ref, st_ref, snorm_ref,
                         pseg_ref, rsel_ref, out_ref, V, Om)
    return kernel


def satnet_forward(z, is_input, S, rinit, *, aux, max_iter=8, lane_target=256):
    """SATNet layer forward (mixing method), Pallas hot path.

    z        : (B, n_vars) float probabilities
    is_input : (B, n_vars) int mask, 1 = known input (frozen), 0 = free
    S        : (N, m) clause matrix, N = 1 + n_vars + aux (variable 0 = truth)
    rinit    : (B, N, k) random init directions (deterministic, passed in)
    returns  : (B, n_vars) output probabilities
    """
    B, n_vars = z.shape
    N = 1 + n_vars + aux
    k = int(rinit.shape[-1])
    m = int(S.shape[-1])
    assert S.shape == (N, m) and rinit.shape == (B, N, k)

    f32 = jnp.float32
    # --- lane-packing geometry --------------------------------------------
    base = max(1, 128 // k)                     # samples per 128-lane block
    granules = -(-B // base)
    max_mult = max(1, lane_target // max(base * k, 1))
    if granules >= 2:
        mult = max(1, min(max_mult, granules // 2))   # keep G >= 2 (v7x: 2 TCs)
    else:
        mult = 1
    Bt = base * mult                            # samples per grid step
    L = Bt * k                                  # lane width of the hot loop
    G = -(-B // Bt)                             # number of groups (grid size)
    B_pad = G * Bt
    N_pad = _round_up(N, 8)
    Ot = max(128, _round_up(Bt, 128))           # lane-dense output width
    use_roll = (k & (k - 1)) == 0               # roll-reduce needs k = 2^j

    z = z.astype(f32)
    # full variable vector: [truth=1, z, aux=0.5]; mask: [1, is_input, 0]
    z_all = jnp.concatenate(
        [jnp.ones((B, 1), f32), z, 0.5 * jnp.ones((B, aux), f32)], axis=-1)
    mask_all = jnp.concatenate(
        [jnp.ones((B, 1), jnp.int32), is_input.astype(jnp.int32),
         jnp.zeros((B, aux), jnp.int32)], axis=-1)

    # Pad batch (frozen dummy samples) and variables (frozen, zero clause rows).
    z_all = jnp.pad(z_all, ((0, B_pad - B), (0, N_pad - N)), constant_values=0.5)
    mask_all = jnp.pad(mask_all, ((0, B_pad - B), (0, N_pad - N)),
                       constant_values=1)
    S_pad = jnp.pad(S.astype(f32), ((0, N_pad - N), (0, 0)))
    rinit_pad = jnp.pad(rinit.astype(f32),
                        ((0, B_pad - B), (0, N_pad - N), (0, 0)),
                        constant_values=1.0)

    # --- unit-sphere embedding init (plain-JAX glue) ------------------------
    r = rinit_pad / jnp.maximum(
        jnp.linalg.norm(rinit_pad, axis=-1, keepdims=True), 1e-12)
    v0 = r[:, 0:1, :]                                             # truth dir
    r_perp = r - jnp.sum(r * v0, axis=-1, keepdims=True) * v0
    r_perp = r_perp / jnp.maximum(
        jnp.linalg.norm(r_perp, axis=-1, keepdims=True), 1e-12)
    # Reference SATNet initialises every variable (input or free) from z.
    z_eff = z_all[..., None]                                      # (B_pad, N_pad, 1)
    vinit = (-jnp.cos(jnp.pi * z_eff) * v0
             + jnp.sin(jnp.pi * z_eff) * r_perp).astype(f32)      # (B_pad, N_pad, k)

    # interleaved lane packing: lane = l*Bt + b  (embedding dim l, sample b)
    vinit_packed = vinit.reshape(G, Bt, N_pad, k).transpose(0, 2, 3, 1) \
                        .reshape(G, N_pad, L)
    free = (mask_all == 0)                                        # (B_pad, N_pad)
    gate_gbi = free.astype(f32).reshape(G, Bt, N_pad)             # (G, Bt, N_pad)
    gate_packed = jnp.broadcast_to(
        gate_gbi.transpose(0, 2, 1)[:, :, None, :], (G, N_pad, k, Bt)) \
        .reshape(G, N_pad, L)

    # per-group union of free variables, compacted (free indices first, ascending)
    free_union = jnp.any(free.reshape(G, Bt, N_pad), axis=1)      # (G, N_pad)
    n_free = jnp.sum(free_union, axis=-1).astype(jnp.int32)       # (G,)
    free_idx = jnp.argsort(jnp.logical_not(free_union).astype(jnp.int32),
                           axis=-1, stable=True).astype(jnp.int32)  # (G, N_pad)

    ST_pad = S_pad.T                                              # (m, N_pad)
    snorm_col = jnp.sum(S_pad * S_pad, axis=-1, keepdims=True)    # (N_pad, 1)

    samp = jnp.arange(L, dtype=jnp.int32) % Bt                    # sample of each lane
    rsel = (samp[:, None] ==
            jnp.arange(Ot, dtype=jnp.int32)[None, :]).astype(f32)  # (L, Ot)

    in_specs = [
        pl.BlockSpec((None, N_pad, L), lambda g, nf, fi: (g, 0, 0)),   # vinit
        pl.BlockSpec((None, N_pad, L), lambda g, nf, fi: (g, 0, 0)),   # gate
        pl.BlockSpec((N_pad, m), lambda g, nf, fi: (0, 0)),            # S
        pl.BlockSpec((m, N_pad), lambda g, nf, fi: (0, 0)),            # S^T
        pl.BlockSpec((N_pad, 1), lambda g, nf, fi: (0, 0)),            # ||s||^2
    ]
    operands = [vinit_packed, gate_packed, S_pad, ST_pad, snorm_col]
    if not use_roll:
        pseg = (samp[:, None] == samp[None, :]).astype(f32)            # (L, L)
        in_specs.append(pl.BlockSpec((L, L), lambda g, nf, fi: (0, 0)))
        operands.append(pseg)
    in_specs.append(pl.BlockSpec((L, Ot), lambda g, nf, fi: (0, 0)))   # out sel
    operands.append(rsel)

    # Rough VMEM budget (double-buffered inputs/outputs + scratch); raise the
    # scoped-VMEM limit above v5e's 16 MiB default, cap safely below v7x's 64 MiB.
    est = 4 * (2 * (2 * N_pad * L + N_pad * Ot)
               + 2 * (N_pad * m + m * N_pad + N_pad * 128 + L * Ot
                      + (0 if use_roll else L * L))
               + N_pad * L + m * L)
    vmem_limit = int(min(max(2 * est, 32 * 2 ** 20), 48 * 2 ** 20))

    kernel = _make_kernel(max_iter, k, Bt, use_roll)
    grid_spec = pltpu.PrefetchScalarGridSpec(
        # TODO(synk): at very large G the (G, N_pad) free-index table should be
        # delivered as per-group blocked SMEM inputs rather than whole-table
        # scalar prefetch (SMEM footprint then stays constant in G).
        num_scalar_prefetch=2,                      # n_free, free_idx -> SMEM
        grid=(G,),
        in_specs=in_specs,
        out_specs=pl.BlockSpec((None, N_pad, Ot), lambda g, nf, fi: (g, 0, 0)),
        scratch_shapes=[pltpu.VMEM((N_pad, L), f32),
                        pltpu.VMEM((m, L), f32)],
    )
    cos_pad = pl.pallas_call(
        kernel,
        grid_spec=grid_spec,
        out_shape=jax.ShapeDtypeStruct((G, N_pad, Ot), f32),
        compiler_params=pltpu.CompilerParams(
            dimension_semantics=("parallel",),
            vmem_limit_bytes=vmem_limit),
    )(n_free, free_idx, *operands)

    cosv = jnp.transpose(cos_pad[:, :, :Bt], (0, 2, 1)).reshape(B_pad, N_pad)
    cosv = cosv[:B, :N]
    # TODO(synk): arccos epilogue stays in plain-JAX glue (no Mosaic acos
    # lowering); CUDA-SATNet eps early-exit / prox_lam damping are omitted.
    probs = jnp.arccos(jnp.clip(cosv, -1.0, 1.0)) / jnp.pi
    return probs[:, 1:1 + n_vars]


def co_classifier_forward(x_in, mask, S, rinit, *, num_class=10, aux=8,
                          max_iter=8):
    """Equivalent of CoClassifier.forward: append num_class unknown slots to
    both the input and the mask, run SATNet, return
    (outputs for the original slots, outputs for the class slots)."""
    B, n = x_in.shape
    mask_full = jnp.concatenate(
        [mask.astype(jnp.int32), jnp.zeros((B, num_class), jnp.int32)], axis=-1)
    z_full = jnp.concatenate(
        [x_in.astype(jnp.float32), jnp.zeros((B, num_class), jnp.float32)],
        axis=-1)
    out = satnet_forward(z_full, mask_full, S, rinit, aux=aux,
                         max_iter=max_iter)
    return out[..., :-num_class], out[..., -num_class:]


if __name__ == "__main__":
    # Small shapes consistent with the module (defaults n=784, m=100, aux=40,
    # scaled down): x is a flat image (B, n) with a per-sample known-pixel
    # mask; SATNet(n + num_class, m, aux); k = sphere-embedding dimension.
    B, n, num_class, aux, m, k = 16, 64, 10, 8, 32, 16
    N = 1 + (n + num_class) + aux          # truth var + main vars + aux vars

    key = jax.random.PRNGKey(0)
    kx, km, ks, kr = jax.random.split(key, 4)
    x_in = jax.random.uniform(kx, (B, n), jnp.float32)            # "pixels"
    mask = (jax.random.uniform(km, (B, n)) > 0.3).astype(jnp.int32)  # ~70% known
    S = jax.random.normal(ks, (N, m), jnp.float32) / jnp.sqrt(float(N))
    rinit = jax.random.normal(kr, (B, N, k), jnp.float32)

    out_main, out_cls = co_classifier_forward(
        x_in, mask, S, rinit, num_class=num_class, aux=aux, max_iter=8)
    out_main, out_cls = jax.block_until_ready((out_main, out_cls))

    assert out_main.shape == (B, n), out_main.shape
    assert out_cls.shape == (B, num_class), out_cls.shape
    for o in (out_main, out_cls):
        assert bool(jnp.all(jnp.isfinite(o)))
        assert bool(jnp.all((o >= 0.0) & (o <= 1.0)))
    print("KERNEL_OK")
</pallas_src>

<mosaic_0001>
module attributes {stable_mosaic.version = 11 : i64} {
  func.func @kernel(%arg0: i32, %arg1: memref<2xi32, #tpu.memory_space<smem>>, %arg2: memref<2x88xi32, #tpu.memory_space<smem>>, %arg3: memref<1x88x128xf32, #tpu.memory_space<vmem>>, %arg4: memref<1x88x128xf32, #tpu.memory_space<vmem>>, %arg5: memref<88x32xf32, #tpu.memory_space<vmem>>, %arg6: memref<32x88xf32, #tpu.memory_space<vmem>>, %arg7: memref<88x1xf32, #tpu.memory_space<vmem>>, %arg8: memref<128x128xf32, #tpu.memory_space<vmem>>, %arg9: memref<1x88x128xf32, #tpu.memory_space<vmem>>, %arg10: memref<88x128xf32, #tpu.memory_space<vmem>>, %arg11: memref<32x128xf32, #tpu.memory_space<vmem>>) attributes {dimension_semantics = [#tpu.dimension_semantics<parallel>], iteration_bounds = array<i64: 2>, scalar_prefetch = 2 : i64, scratch_operands = 2 : i64, tpu.core_type = #tpu.core_type<tc>, window_params = [{transform_indices = @transform_0, window_bounds = array<i64: 1, 88, 128>}, {transform_indices = @transform_1, window_bounds = array<i64: 1, 88, 128>}, {pipeline_mode = #tpu.pipeline_mode<synchronous>, transform_indices = @transform_2, window_bounds = array<i64: 88, 32>}, {pipeline_mode = #tpu.pipeline_mode<synchronous>, transform_indices = @transform_3, window_bounds = array<i64: 32, 88>}, {pipeline_mode = #tpu.pipeline_mode<synchronous>, transform_indices = @transform_4, window_bounds = array<i64: 88, 1>}, {pipeline_mode = #tpu.pipeline_mode<synchronous>, transform_indices = @transform_5, window_bounds = array<i64: 128, 128>}, {transform_indices = @transform_6, window_bounds = array<i64: 1, 88, 128>}]} {
    %0 = arith.index_cast %arg0 : i32 to index
    %1 = memref.load %arg1[%0] : memref<2xi32, #tpu.memory_space<smem>>
    %c0 = arith.constant 0 : index
    %c0_0 = arith.constant 0 : index
    %c0_1 = arith.constant 0 : index
    %2 = vector.load %arg3[%c0, %c0_0, %c0_1] : memref<1x88x128xf32, #tpu.memory_space<vmem>>, vector<1x88x128xf32>
    %3 = vector.shape_cast %2 : vector<1x88x128xf32> to vector<88x128xf32>
    %c0_2 = arith.constant 0 : index
    %c0_3 = arith.constant 0 : index
    %4 = vector.load %arg10[%c0_2, %c0_3] : memref<88x128xf32, #tpu.memory_space<vmem>>, vector<88x128xf32>
    tpu.vector_store %arg10[%c0_2, %c0_3], %3 {strides = array<i32>} : memref<88x128xf32, #tpu.memory_space<vmem>>, vector<88x128xf32>,
    %5 = tpu.iota {dimensions = array<i32: 1>} : vector<1x88xi32>
    %c0_i32 = arith.constant 0 : i32
    %c8_i32 = arith.constant 8 : i32
    %6 = arith.addi %c0_i32, %c8_i32 : i32
    %c1_i32 = arith.constant 1 : i32
    scf.for %arg12 = %c0_i32 to %6 step %c1_i32  : i32 {
      %c0_14 = arith.constant 0 : index
      %c0_15 = arith.constant 0 : index
      %18 = vector.load %arg6[%c0_14, %c0_15] : memref<32x88xf32, #tpu.memory_space<vmem>>, vector<32x88xf32>
      %c0_16 = arith.constant 0 : index
      %c0_17 = arith.constant 0 : index
      %19 = vector.load %arg10[%c0_16, %c0_17] : memref<88x128xf32, #tpu.memory_space<vmem>>, vector<88x128xf32>
      %cst_18 = arith.constant dense<0.000000e+00> : vector<32x128xf32>
      %20 = tpu.matmul %18, %19, %cst_18 {dimension_numbers = #tpu.dot_dimension_numbers<[1], [0], [0], [1], [0, 0, 1, 1], [], []>} : vector<32x88xf32>, vector<88x128xf32>, vector<32x128xf32> -> vector<32x128xf32>
      %c0_19 = arith.constant 0 : index
      %c0_20 = arith.constant 0 : index
      %21 = vector.load %arg11[%c0_19, %c0_20] : memref<32x128xf32, #tpu.memory_space<vmem>>, vector<32x128xf32>
      tpu.vector_store %arg11[%c0_19, %c0_20], %20 {strides = array<i32>} : memref<32x128xf32, #tpu.memory_space<vmem>>, vector<32x128xf32>,
      %c0_i32_21 = arith.constant 0 : i32
      %22 = arith.subi %1, %c0_i32_21 : i32
      %c1_i32_22 = arith.constant 1 : i32
      %c1_i32_23 = arith.constant 1 : i32
      %23 = arith.subi %c1_i32_22, %c1_i32_23 : i32
      %24 = arith.addi %22, %23 : i32
      %c1_i32_24 = arith.constant 1 : i32
      %25 = arith.divsi %24, %c1_i32_24 : i32
      %c1_i32_25 = arith.constant 1 : i32
      %c0_i32_26 = arith.constant 0 : i32
      %c0_i32_27 = arith.constant 0 : i32
      %26 = arith.subi %25, %c0_i32_27 : i32
      %27 = arith.addi %c0_i32_27, %26 : i32
      %c1_i32_28 = arith.constant 1 : i32
      scf.for %arg13 = %c0_i32_27 to %27 step %c1_i32_28  : i32 {
        %28 = arith.muli %arg13, %c1_i32_25 : i32
        %29 = arith.addi %c0_i32_26, %28 : i32
        %30 = arith.index_cast %arg0 : i32 to index
        %31 = arith.index_cast %29 : i32 to index
        %32 = memref.load %arg2[%30, %31] : memref<2x88xi32, #tpu.memory_space<smem>>
        %33 = arith.index_cast %32 : i32 to index
        %c0_29 = arith.constant 0 : index
        %34 = vector.load %arg5[%33, %c0_29] : memref<88x32xf32, #tpu.memory_space<vmem>>, vector<1x32xf32>
        %35 = arith.index_cast %32 : i32 to index
        %c0_30 = arith.constant 0 : index
        %36 = vector.load %arg10[%35, %c0_30] : memref<88x128xf32, #tpu.memory_space<vmem>>, vector<1x128xf32>
        %c0_31 = arith.constant 0 : index
        %37 = arith.index_cast %32 : i32 to index
        %c0_32 = arith.constant 0 : index
        %38 = vector.load %arg4[%c0_31, %37, %c0_32] : memref<1x88x128xf32, #tpu.memory_space<vmem>>, vector<1x1x128xf32>
        %39 = vector.shape_cast %38 : vector<1x1x128xf32> to vector<1x128xf32>
        %40 = arith.index_cast %32 : i32 to index
        %c0_33 = arith.constant 0 : index
        %41 = vector.load %arg7[%40, %c0_33] : memref<88x1xf32, #tpu.memory_space<vmem>>, vector<1x1xf32>
        %c0_34 = arith.constant 0 : index
        %c0_35 = arith.constant 0 : index
        %42 = vector.load %arg11[%c0_34, %c0_35] : memref<32x128xf32, #tpu.memory_space<vmem>>, vector<32x128xf32>
        %cst_36 = arith.constant dense<0.000000e+00> : vector<1x128xf32>
        %43 = tpu.matmul %34, %42, %cst_36 {dimension_numbers = #tpu.dot_dimension_numbers<[1], [0], [0], [1], [0, 0, 1, 1], [], []>} : vector<1x32xf32>, vector<32x128xf32>, vector<1x128xf32> -> vector<1x128xf32>
        %44 = vector.broadcast %41 : vector<1x1xf32> to vector<1x128xf32>
        %45 = arith.mulf %44, %36 : vector<1x128xf32>
        %46 = arith.subf %43, %45 : vector<1x128xf32>
        %47 = arith.mulf %46, %46 : vector<1x128xf32>
        %c8_i32_37 = arith.constant 8 : i32
        %48 = tpu.dynamic_rotate %47 by %c8_i32_37 dim 1 : vector<1x128xf32>, i32 -> vector<1x128xf32>
        %49 = arith.addf %47, %48 : vector<1x128xf32>
        %c16_i32 = arith.constant 16 : i32
        %50 = tpu.dynamic_rotate %49 by %c16_i32 dim 1 : vector<1x128xf32>, i32 -> vector<1x128xf32>
        %51 = arith.addf %49, %50 : vector<1x128xf32>
        %c32_i32 = arith.constant 32 : i32
        %52 = tpu.dynamic_rotate %51 by %c32_i32 dim 1 : vector<1x128xf32>, i32 -> vector<1x128xf32>
        %53 = arith.addf %51, %52 : vector<1x128xf32>
        %c64_i32 = arith.constant 64 : i32
        %54 = tpu.dynamic_rotate %53 by %c64_i32 dim 1 : vector<1x128xf32>, i32 -> vector<1x128xf32>
        %55 = arith.addf %53, %54 : vector<1x128xf32>
        %cst_38 = arith.constant 0.000000e+00 : f32
        %56 = vector.broadcast %cst_38 : f32 to vector<1x128xf32>
        %57 = arith.subf %56, %46 : vector<1x128xf32>
        %cst_39 = arith.constant 9.99999996E-13 : f32
        %58 = vector.broadcast %cst_39 : f32 to vector<1x128xf32>
        %59 = arith.maximumf %55, %58 : vector<1x128xf32>
        %60 = math.rsqrt %59 : vector<1x128xf32>
        %61 = arith.mulf %57, %60 : vector<1x128xf32>
        %cst_40 = arith.constant 9.99999996E-13 : f32
        %62 = vector.broadcast %cst_40 : f32 to vector<1x128xf32>
        %63 = arith.cmpf ogt, %55, %62 : vector<1x128xf32>
        %64 = arith.select %63, %61, %36 : vector<1x128xi1>, vector<1x128xf32>
        %65 = arith.subf %64, %36 : vector<1x128xf32>
        %66 = arith.mulf %39, %65 : vector<1x128xf32>
        %67 = arith.addf %36, %66 : vector<1x128xf32>
        %68 = arith.index_cast %32 : i32 to index
        %c0_41 = arith.constant 0 : index
        %69 = vector.load %arg10[%68, %c0_41] : memref<88x128xf32, #tpu.memory_space<vmem>>, vector<1x128xf32>
        tpu.vector_store %arg10[%68, %c0_41], %67 {strides = array<i32>} : memref<88x128xf32, #tpu.memory_space<vmem>>, vector<1x128xf32>,
        %70 = vector.broadcast %32 : i32 to vector<1x88xi32>
        %71 = arith.cmpi eq, %5, %70 : vector<1x88xi32>
        %72 = arith.extui %71 : vector<1x88xi1> to vector<1x88xi32>
        %73 = arith.sitofp %72 : vector<1x88xi32> to vector<1x88xf32>
        %c0_42 = arith.constant 0 : index
        %c0_43 = arith.constant 0 : index
        %74 = vector.load %arg6[%c0_42, %c0_43] : memref<32x88xf32, #tpu.memory_space<vmem>>, vector<32x88xf32>
        %cst_44 = arith.constant dense<0.000000e+00> : vector<32x1xf32>
        %75 = tpu.matmul %74, %73, %cst_44 {dimension_numbers = #tpu.dot_dimension_numbers<[1], [1], [0], [0], [0, 0, 1, 0], [], []>} : vector<32x88xf32>, vector<1x88xf32>, vector<32x1xf32> -> vector<32x1xf32>
        %c0_45 = arith.constant 0 : index
        %c0_46 = arith.constant 0 : index
        %76 = vector.load %arg11[%c0_45, %c0_46] : memref<32x128xf32, #tpu.memory_space<vmem>>, vector<32x128xf32>
        %77 = vector.broadcast %75 : vector<32x1xf32> to vector<32x128xf32>
        %78 = vector.broadcast %66 : vector<1x128xf32> to vector<32x128xf32>
        %79 = arith.mulf %77, %78 : vector<32x128xf32>
        %80 = arith.addf %76, %79 : vector<32x128xf32>
        %c0_47 = arith.constant 0 : index
        %c0_48 = arith.constant 0 : index
        %81 = vector.load %arg11[%c0_47, %c0_48] : memref<32x128xf32, #tpu.memory_space<vmem>>, vector<32x128xf32>
        tpu.vector_store %arg11[%c0_47, %c0_48], %80 {strides = array<i32>} : memref<32x128xf32, #tpu.memory_space<vmem>>, vector<32x128xf32>,
      }
    }
    %c0_4 = arith.constant 0 : index
    %c0_5 = arith.constant 0 : index
    %7 = vector.load %arg10[%c0_4, %c0_5] : memref<88x128xf32, #tpu.memory_space<vmem>>, vector<88x128xf32>
    %c0_6 = arith.constant 0 : index
    %c0_7 = arith.constant 0 : index
    %8 = vector.load %arg10[%c0_6, %c0_7] : memref<88x128xf32, #tpu.memory_space<vmem>>, vector<1x128xf32>
    %9 = vector.broadcast %8 : vector<1x128xf32> to vector<88x128xf32>
    %10 = arith.mulf %7, %9 : vector<88x128xf32>
    %c0_8 = arith.constant 0 : index
    %c0_9 = arith.constant 0 : index
    %11 = vector.load %arg8[%c0_8, %c0_9] : memref<128x128xf32, #tpu.memory_space<vmem>>, vector<128x128xf32>
    %cst = arith.constant dense<0.000000e+00> : vector<88x128xf32>
    %12 = tpu.matmul %10, %11, %cst {dimension_numbers = #tpu.dot_dimension_numbers<[1], [0], [0], [1], [0, 0, 1, 1], [], []>} : vector<88x128xf32>, vector<128x128xf32>, vector<88x128xf32> -> vector<88x128xf32>
    %cst_10 = arith.constant 0.000000e+00 : f32
    %13 = vector.broadcast %cst_10 : f32 to vector<88x128xf32>
    %14 = arith.subf %13, %12 : vector<88x128xf32>
    %c0_11 = arith.constant 0 : index
    %c0_12 = arith.constant 0 : index
    %c0_13 = arith.constant 0 : index
    %15 = vector.load %arg9[%c0_11, %c0_12, %c0_13] : memref<1x88x128xf32, #tpu.memory_space<vmem>>, vector<1x88x128xf32>
    %16 = vector.shape_cast %15 : vector<1x88x128xf32> to vector<88x128xf32>
    %17 = vector.shape_cast %14 : vector<88x128xf32> to vector<1x88x128xf32>
    tpu.vector_store %arg9[%c0_11, %c0_12, %c0_13], %17 {strides = array<i32>} : memref<1x88x128xf32, #tpu.memory_space<vmem>>, vector<1x88x128xf32>,
    return
  }
  func.func @transform_0(%arg0: i32, %arg1: memref<2xi32, #tpu.memory_space<smem>>, %arg2: memref<2x88xi32, #tpu.memory_space<smem>>) -> (i32, i32, i32) {
    %c0_i32 = arith.constant 0 : i32
    %c0_i32_0 = arith.constant 0 : i32
    %c0_i32_1 = arith.constant 0 : i32
    return %arg0, %c0_i32, %c0_i32_0 : i32, i32, i32
  }
  func.func @transform_1(%arg0: i32, %arg1: memref<2xi32, #tpu.memory_space<smem>>, %arg2: memref<2x88xi32, #tpu.memory_space<smem>>) -> (i32, i32, i32) {
    %c0_i32 = arith.constant 0 : i32
    %c0_i32_0 = arith.constant 0 : i32
    %c0_i32_1 = arith.constant 0 : i32
    return %arg0, %c0_i32, %c0_i32_0 : i32, i32, i32
  }
  func.func @transform_2(%arg0: i32, %arg1: memref<2xi32, #tpu.memory_space<smem>>, %arg2: memref<2x88xi32, #tpu.memory_space<smem>>) -> (i32, i32) {
    %c0_i32 = arith.constant 0 : i32
    %c0_i32_0 = arith.constant 0 : i32
    %c0_i32_1 = arith.constant 0 : i32
    return %c0_i32, %c0_i32_0 : i32, i32
  }
  func.func @transform_3(%arg0: i32, %arg1: memref<2xi32, #tpu.memory_space<smem>>, %arg2: memref<2x88xi32, #tpu.memory_space<smem>>) -> (i32, i32) {
    %c0_i32 = arith.constant 0 : i32
    %c0_i32_0 = arith.constant 0 : i32
    %c0_i32_1 = arith.constant 0 : i32
    return %c0_i32, %c0_i32_0 : i32, i32
  }
  func.func @transform_4(%arg0: i32, %arg1: memref<2xi32, #tpu.memory_space<smem>>, %arg2: memref<2x88xi32, #tpu.memory_space<smem>>) -> (i32, i32) {
    %c0_i32 = arith.constant 0 : i32
    %c0_i32_0 = arith.constant 0 : i32
    %c0_i32_1 = arith.constant 0 : i32
    return %c0_i32, %c0_i32_0 : i32, i32
  }
  func.func @transform_5(%arg0: i32, %arg1: memref<2xi32, #tpu.memory_space<smem>>, %arg2: memref<2x88xi32, #tpu.memory_space<smem>>) -> (i32, i32) {
    %c0_i32 = arith.constant 0 : i32
    %c0_i32_0 = arith.constant 0 : i32
    %c0_i32_1 = arith.constant 0 : i32
    return %c0_i32, %c0_i32_0 : i32, i32
  }
  func.func @transform_6(%arg0: i32, %arg1: memref<2xi32, #tpu.memory_space<smem>>, %arg2: memref<2x88xi32, #tpu.memory_space<smem>>) -> (i32, i32, i32) {
    %c0_i32 = arith.constant 0 : i32
    %c0_i32_0 = arith.constant 0 : i32
    %c0_i32_1 = arith.constant 0 : i32
    return %arg0, %c0_i32, %c0_i32_0 : i32, i32, i32
  }
}

</mosaic_0001>

<llo_original>
// kernel: tpu_custom_call.1
$region0: #{tpu_custom_call.1}
  #allocation0 [shape = 'u32[]', space=smem, size = 0x4, offset = 0x4, fixed_abs, tag = 'smem constant byte address 0x4 - core index']
  #allocation1 [shape = 'u32[72,128]{1,0:T(1,128)}', space=vmem, size = 0x9000, scoped, tag = 'internal scratch']
  #allocation2 [shape = 'f32[88,128]{1,0:T(8,128)}', space=vmem, size = 0xb000, scoped, tag = 'scratch operand']
  #allocation3 [shape = 'f32[32,128]{1,0:T(8,128)}', space=vmem, size = 0x4000, scoped, tag = 'scratch operand']
  #allocation4 [shape = 's32[1]{0}', space=sflag, size = 0x4, scoped, tag = 'scoped memory for tpu_custom_call.1']
  #allocation5 [shape = 'u8[512]{0}', space=smem, size = 0x200, scoped, tag = 'prefetched SMEM operand 0']
  #allocation6 [shape = 'u8[1024]{0}', space=smem, size = 0x400, scoped, tag = 'prefetched SMEM operand 1']
  %s0 = inlined_call_operand.hbm [shape: s32[2], index: 0, kind: input, shape index: {}]
  %s1 = inlined_call_operand.hbm [shape: s32[2,88], index: 1, kind: input, shape index: {}]
  %s2 = inlined_call_operand.vmem [shape: f32[2,88,128], index: 2, kind: input, shape index: {}]
  %s3 = inlined_call_operand.hbm [shape: f32[2,88,128], index: 3, kind: input, shape index: {}]
  %s4 = inlined_call_operand.vmem [shape: f32[88,32], index: 4, kind: input, shape index: {}]
  %s5 = inlined_call_operand.vmem [shape: f32[32,88], index: 5, kind: input, shape index: {}]
  %s6 = inlined_call_operand.vmem [shape: f32[88,1], index: 6, kind: input, shape index: {}]
  %s7 = inlined_call_operand.hbm [shape: f32[128,128], index: 7, kind: input, shape index: {}]
  %s8 = inlined_call_operand.hbm [shape: f32[2,88,128], index: 8, kind: output, shape index: {}]
  %s9 = sld [smem:[#allocation0]]
  $region79: #{tpu_custom_call.1} parent=0
    _
  %s11 = ssub.s32 1, %s9
  %s12 = scalar_select 0, %s11, %s9
  %s14 = sshll.u32 %s0, 4
  %s15 = int_to_ptr.hbm [resolvable:$true] %s14
  %17 = dma.hbm_to_smem %s15, 16, [#allocation5], [#allocation4]
  %s19 = sshll.u32 %s1, 4
  %s20 = int_to_ptr.hbm [resolvable:$true] %s19
  %22 = dma.hbm_to_smem %s20, 32, [#allocation6], [#allocation4]
  %24 = dma.done [#allocation4], 48
  %25 = sfence
  $region1: #{tpu_custom_call.1} parent=0
    #allocation7 [shape = 'u8[90112]{0}', space=vmem, size = 0x16000, scoped, tag = 'input window, operand 3']
    #allocation8 [shape = 's32[2]{0}', space=sflag, size = 0x8, scoped, tag = 'scoped memory for tpu_custom_call.1']
    #allocation9 [shape = 's32[2]{0}', space=sflag, size = 0x8, scoped, tag = 'scoped memory for tpu_custom_call.1']
    #allocation10 [shape = 'u8[65536]{0}', space=vmem, size = 0x10000, scoped, tag = 'input window, operand 7, single buffered']
    #allocation11 [shape = 's32[1]{0}', space=sflag, size = 0x4, scoped, tag = 'scoped memory for tpu_custom_call.1']
    #allocation12 [shape = 'u8[90112]{0}', space=vmem, size = 0x16000, scoped, tag = 'output window, operand 0']
    %26 = vsyncpa [#allocation8], 0
    %s27 = scalar_lea.sflag [#allocation8], 1
    %28 = vsyncpa %s27, 0
    %29 = vsyncpa [#allocation11], 0
    %30 = vsyncpa [#allocation9], 0
    %s31 = scalar_lea.sflag [#allocation9], 1
    %32 = vsyncpa %s31, 0
    loop: start=0, step=1, limit=4
    $region2: #{tpu_custom_call.1} parent=1 // loop_pre_header
      _
    $region3: #{tpu_custom_call.1} parent=1 // loop_header
      %s34 = sphi 0, %s38
      %p35 = scmp.ge.s32.totalorder %s34, 4
      %s44 = sphi 0, %s46
      %s47 = sphi 0, %s44
      %s48 = sphi 0, %s47
      %s64 = sphi 0, %s48
      %s70 = sphi 0, %s72
      %s73 = sphi 0, %s70
      %s74 = sphi 0, %s73
      %s90 = sphi 0, %s74
      %s94 = sphi 0, %s94
      %s96 = sphi 0, %s94
      %s97 = sphi 0, %s96
      %s111 = sphi 0, %s97
      %s115 = sphi 0, %s115
      %s117 = sphi 0, %s115
      %s118 = sphi 0, %s117
      %s132 = sphi 0, %s118
      %s136 = sphi 0, %s136
      %s138 = sphi 0, %s136
      %s139 = sphi 0, %s138
      %s153 = sphi 0, %s139
      %s157 = sphi 0, %s157
      %s159 = sphi 0, %s157
      %s160 = sphi 0, %s159
      %s174 = sphi 0, %s160
      %s180 = sphi 0, %s182
      %s183 = sphi 0, %s180
      %s184 = sphi 0, %s183
      %s200 = sphi 0, %s184
    $region4: #{tpu_custom_call.1} parent=1 // loop_header_branch
      %37 = sbr.rel (%p35) target = $region8
    $region5: #{tpu_custom_call.1} parent=1 // loop_body
      %s39 = ssub.s32 %s34, 1
      %s40 = ssub.s32 %s34, 2
      %s41 = sadd.s32 %s34, 1
      %s42 = ssub.s32 %s34, %s41
      %p43 = scmp.eq.s32.totalorder %s42, 0
      %s45 = sadd.s32 %s44, 1
      %s46 = scalar_select %p43, %s44, %s45
      %p49 = pneg %p43
      %p50 = scmp.eq.s32.totalorder %s34, 1
      %p51 = por %p49, %p50
      %p52 = scmp.ne.s32.totalorder %s44, %s47
      %p53 = scmp.eq.s32.totalorder %s34, 0
      %p54 = por %p52, %p53
      %p55 = scmp.ne.s32.totalorder %s44, %s47
      %p56 = scmp.eq.s32.totalorder %s39, 1
      %p57 = por %p55, %p56
      %p58 = scmp.ne.s32.totalorder %s47, %s48
      %p59 = scmp.eq.s32.totalorder %s39, 0
      %p60 = por %p58, %p59
      %p61 = scmp.ne.s32.totalorder %s47, %s48
      %p62 = scmp.eq.s32.totalorder %s40, 1
      %p63 = por %p61, %p62
      %p65 = scmp.ne.s32.totalorder %s48, %s64
      %p66 = scmp.eq.s32.totalorder %s40, 0
      %p67 = por %p65, %p66
      %s68 = ssub.s32 %s34, %s41
      %p69 = scmp.eq.s32.totalorder %s68, 0
      %s71 = sadd.s32 %s70, 1
      %s72 = scalar_select %p69, %s70, %s71
      %p75 = pneg %p69
      %p76 = scmp.eq.s32.totalorder %s34, 1
      %p77 = por %p75, %p76
      %p78 = scmp.ne.s32.totalorder %s70, %s73
      %p79 = scmp.eq.s32.totalorder %s34, 0
      %p80 = por %p78, %p79
      %p81 = scmp.ne.s32.totalorder %s70, %s73
      %p82 = scmp.eq.s32.totalorder %s39, 1
      %p83 = por %p81, %p82
      %p84 = scmp.ne.s32.totalorder %s73, %s74
      %p85 = scmp.eq.s32.totalorder %s39, 0
      %p86 = por %p84, %p85
      %p87 = scmp.ne.s32.totalorder %s73, %s74
      %p88 = scmp.eq.s32.totalorder %s40, 1
      %p89 = por %p87, %p88
      %p91 = scmp.ne.s32.totalorder %s74, %s90
      %p92 = scmp.eq.s32.totalorder %s40, 0
      %p93 = por %p91, %p92
      %s95 = sadd.s32 %s94, 1
      %p98 = scmp.eq.s32.totalorder %s34, 1
      %p99 = scmp.ne.s32.totalorder %s94, %s96
      %p100 = scmp.eq.s32.totalorder %s34, 0
      %p101 = por %p99, %p100
      %p102 = scmp.ne.s32.totalorder %s94, %s96
      %p103 = scmp.eq.s32.totalorder %s39, 1
      %p104 = por %p102, %p103
      %p105 = scmp.ne.s32.totalorder %s96, %s97
      %p106 = scmp.eq.s32.totalorder %s39, 0
      %p107 = por %p105, %p106
      %p108 = scmp.ne.s32.totalorder %s96, %s97
      %p109 = scmp.eq.s32.totalorder %s40, 1
      %p110 = por %p108, %p109
      %p112 = scmp.ne.s32.totalorder %s97, %s111
      %p113 = scmp.eq.s32.totalorder %s40, 0
      %p114 = por %p112, %p113
      %s116 = sadd.s32 %s115, 1
      %p119 = scmp.eq.s32.totalorder %s34, 1
      %p120 = scmp.ne.s32.totalorder %s115, %s117
      %p121 = scmp.eq.s32.totalorder %s34, 0
      %p122 = por %p120, %p121
      %p123 = scmp.ne.s32.totalorder %s115, %s117
      %p124 = scmp.eq.s32.totalorder %s39, 1
      %p125 = por %p123, %p124
      %p126 = scmp.ne.s32.totalorder %s117, %s118
      %p127 = scmp.eq.s32.totalorder %s39, 0
      %p128 = por %p126, %p127
      %p129 = scmp.ne.s32.totalorder %s117, %s118
      %p130 = scmp.eq.s32.totalorder %s40, 1
      %p131 = por %p129, %p130
      %p133 = scmp.ne.s32.totalorder %s118, %s132
      %p134 = scmp.eq.s32.totalorder %s40, 0
      %p135 = por %p133, %p134
      %s137 = sadd.s32 %s136, 1
      %p140 = scmp.eq.s32.totalorder %s34, 1
      %p141 = scmp.ne.s32.totalorder %s136, %s138
      %p142 = scmp.eq.s32.totalorder %s34, 0
      %p143 = por %p141, %p142
      %p144 = scmp.ne.s32.totalorder %s136, %s138
      %p145 = scmp.eq.s32.totalorder %s39, 1
      %p146 = por %p144, %p145
      %p147 = scmp.ne.s32.totalorder %s138, %s139
      %p148 = scmp.eq.s32.totalorder %s39, 0
      %p149 = por %p147, %p148
      %p150 = scmp.ne.s32.totalorder %s138, %s139
      %p151 = scmp.eq.s32.totalorder %s40, 1
      %p152 = por %p150, %p151
      %p154 = scmp.ne.s32.totalorder %s139, %s153
      %p155 = scmp.eq.s32.totalorder %s40, 0
      %p156 = por %p154, %p155
      %s158 = sadd.s32 %s157, 1
      %p161 = scmp.eq.s32.totalorder %s34, 1
      %p162 = scmp.ne.s32.totalorder %s157, %s159
      %p163 = scmp.eq.s32.totalorder %s34, 0
      %p164 = por %p162, %p163
      %p165 = scmp.ne.s32.totalorder %s157, %s159
      %p166 = scmp.eq.s32.totalorder %s39, 1
      %p167 = por %p165, %p166
      %p168 = scmp.ne.s32.totalorder %s159, %s160
      %p169 = scmp.eq.s32.totalorder %s39, 0
      %p170 = por %p168, %p169
      %p171 = scmp.ne.s32.totalorder %s159, %s160
      %p172 = scmp.eq.s32.totalorder %s40, 1
      %p173 = por %p171, %p172
      %p175 = scmp.ne.s32.totalorder %s160, %s174
      %p176 = scmp.eq.s32.totalorder %s40, 0
      %p177 = por %p175, %p176
      %s178 = ssub.s32 %s34, %s41
      %p179 = scmp.eq.s32.totalorder %s178, 0
      %s181 = sadd.s32 %s180, 1
      %s182 = scalar_select %p179, %s180, %s181
      %p185 = pneg %p179
      %p186 = scmp.eq.s32.totalorder %s34, 1
      %p187 = por %p185, %p186
      %p188 = scmp.ne.s32.totalorder %s180, %s183
      %p189 = scmp.eq.s32.totalorder %s34, 0
      %p190 = por %p188, %p189
      %p191 = scmp.ne.s32.totalorder %s180, %s183
      %p192 = scmp.eq.s32.totalorder %s39, 1
      %p193 = por %p191, %p192
      %p194 = scmp.ne.s32.totalorder %s183, %s184
      %p195 = scmp.eq.s32.totalorder %s39, 0
      %p196 = por %p194, %p195
      %p197 = scmp.ne.s32.totalorder %s183, %s184
      %p198 = scmp.eq.s32.totalorder %s40, 1
      %p199 = por %p197, %p198
      %p201 = scmp.ne.s32.totalorder %s184, %s200
      %p202 = scmp.eq.s32.totalorder %s40, 0
      %p203 = por %p201, %p202
      %p204 = scmp.le.s32.totalorder 1, %s34
      %p205 = scmp.lt.s32.totalorder %s34, 3
      %p206 = pnand %p204, %p205
      %p207 = pneg %p206
      // Predicated region
      $region9: #{tpu_custom_call.1} parent=5 // pred_check
        _
      $region10: #{tpu_custom_call.1} parent=5 // pred_check_branch
        %209 = sbr.rel (%p206) target = $region12
      $region11: #{tpu_custom_call.1} parent=5 // pred_region
        %s210 = ssub.s32 %s34, 1
        // Predicated region
        $region13: #{tpu_custom_call.1} parent=11 // pred_check
          %p211 = pneg %p107
        $region14: #{tpu_custom_call.1} parent=11 // pred_check_branch
          %213 = sbr.rel (%p211) target = $region16
        $region15: #{tpu_custom_call.1} parent=11 // pred_region
          _
        $region16: #{tpu_custom_call.1} parent=11 // pred_fallthru
          _
        // Predicated region
        $region17: #{tpu_custom_call.1} parent=11 // pred_check
          %p214 = pneg %p128
        $region18: #{tpu_custom_call.1} parent=11 // pred_check_branch
          %216 = sbr.rel (%p214) target = $region20
        $region19: #{tpu_custom_call.1} parent=11 // pred_region
          _
        $region20: #{tpu_custom_call.1} parent=11 // pred_fallthru
          _
        // Predicated region
        $region21: #{tpu_custom_call.1} parent=11 // pred_check
          %p217 = pneg %p149
        $region22: #{tpu_custom_call.1} parent=11 // pred_check_branch
          %219 = sbr.rel (%p217) target = $region24
        $region23: #{tpu_custom_call.1} parent=11 // pred_region
          _
        $region24: #{tpu_custom_call.1} parent=11 // pred_fallthru
          _
        // Predicated region
        $region25: #{tpu_custom_call.1} parent=11 // pred_check
          %p220 = pneg %p170
        $region26: #{tpu_custom_call.1} parent=11 // pred_check_branch
          %222 = sbr.rel (%p220) target = $region28
        $region27: #{tpu_custom_call.1} parent=11 // pred_region
          %224 = vsyncadd [#allocation11], 0
          %s225 = sshll.u32 %s7, 4
          %s226 = int_to_ptr.hbm [resolvable:$true] %s225
          %s227 = sshll.u32 [#allocation10], 4
          %s228 = int_to_ptr.vmem [resolvable:$true] %s227
          %233 = dma.hbm_to_vmem [thread:$0]  %s226, 2048, %s228, [#allocation11], 128, 128, 8
        $region28: #{tpu_custom_call.1} parent=11 // pred_fallthru
          _
      $region12: #{tpu_custom_call.1} parent=5 // pred_fallthru
        _
      %p234 = scmp.lt.s32.totalorder %s34, 2
      // Predicated region
      $region29: #{tpu_custom_call.1} parent=5 // pred_check
        %p235 = pneg %p234
      $region30: #{tpu_custom_call.1} parent=5 // pred_check_branch
        %237 = sbr.rel (%p235) target = $region32
      $region31: #{tpu_custom_call.1} parent=5 // pred_region
        // Predicated region
        $region33: #{tpu_custom_call.1} parent=31 // pred_check
          %p238 = pneg %p54
        $region34: #{tpu_custom_call.1} parent=31 // pred_check_branch
          %240 = sbr.rel (%p238) target = $region36
        $region35: #{tpu_custom_call.1} parent=31 // pred_region
          %p241 = scmp.lt.s32.totalorder %s34, 1
          %s242 = scalar_select %p241, %s34, 1
          %s243 = smul.addr %s242, 11
          %s244 = smul.addr %s243, 8
          %s245 = scalar_lea.vmem %s2, %s244
        $region36: #{tpu_custom_call.1} parent=31 // pred_fallthru
          _
        // Predicated region
        $region37: #{tpu_custom_call.1} parent=31 // pred_check
          %p246 = pneg %p80
        $region38: #{tpu_custom_call.1} parent=31 // pred_check_branch
          %248 = sbr.rel (%p246) target = $region40
        $region39: #{tpu_custom_call.1} parent=31 // pred_region
          %s249 = sand.u32 %s70, 1
          %s250 = scalar_lea.sflag [#allocation8], %s249
          %s251 = sand.u32 %s70, 1
          %s252 = smul.addr %s251, 88
          %s253 = scalar_lea.vmem [#allocation7], %s252
          %255 = vsyncadd %s250, 0
          %s256 = smul.addr %s34, 11
          %s257 = smul.addr %s256, 8
          %s258 = scalar_lea.hbm %s3, %s257
          %s259 = sshll.u32 %s258, 4
          %s260 = int_to_ptr.hbm [resolvable:$true] %s259
          %s261 = sshll.u32 %s253, 4
          %s262 = int_to_ptr.vmem [resolvable:$true] %s261
          %267 = dma.hbm_to_vmem [thread:$0]  %s260, 1408, %s262, %s250, 128, 128, 8
        $region40: #{tpu_custom_call.1} parent=31 // pred_fallthru
          _
      $region32: #{tpu_custom_call.1} parent=5 // pred_fallthru
        _
      %p268 = scmp.le.s32.totalorder 1, %s34
      %p269 = scmp.lt.s32.totalorder %s34, 3
      %p270 = pnand %p268, %p269
      %p271 = pneg %p270
      // Predicated region
      $region41: #{tpu_custom_call.1} parent=5 // pred_check
        _
      $region42: #{tpu_custom_call.1} parent=5 // pred_check_branch
        %273 = sbr.rel (%p270) target = $region44
      $region43: #{tpu_custom_call.1} parent=5 // pred_region
        %s274 = ssub.s32 %s34, 1
        %s275 = sand.u32 %s73, 1
        %s276 = scalar_lea.sflag [#allocation8], %s275
        %s277 = sand.u32 %s73, 1
        %s278 = smul.addr %s277, 88
        %s279 = scalar_lea.vmem [#allocation7], %s278
        // Predicated region
        $region45: #{tpu_custom_call.1} parent=43 // pred_check
          %p280 = pneg %p86
        $region46: #{tpu_custom_call.1} parent=43 // pred_check_branch
          %282 = sbr.rel (%p280) target = $region48
        $region47: #{tpu_custom_call.1} parent=43 // pred_region
          %284 = dma.done %s276, 1408
        $region48: #{tpu_custom_call.1} parent=43 // pred_fallthru
          _
        // Predicated region
        $region49: #{tpu_custom_call.1} parent=43 // pred_check
          %p285 = pneg %p170
        $region50: #{tpu_custom_call.1} parent=43 // pred_check_branch
          %287 = sbr.rel (%p285) target = $region52
        $region51: #{tpu_custom_call.1} parent=43 // pred_region
          %289 = dma.done [#allocation11], 2048
        $region52: #{tpu_custom_call.1} parent=43 // pred_fallthru
          _
        %p290 = scmp.lt.s32.totalorder %s39, 1
        %s291 = scalar_select %p290, %s39, 1
        %s292 = smul.addr %s291, 11
        %s293 = smul.addr %s292, 8
        %s294 = scalar_lea.vmem %s2, %s293
        %p295 = pneg %p60
        %p296 = pneg %p57
        %s297 = sand.u32 %s73, 1
        %s298 = scalar_lea.sflag [#allocation8], %s297
        %s299 = sand.u32 %s73, 1
        %s300 = smul.addr %s299, 88
        %s301 = scalar_lea.vmem [#allocation7], %s300
        %p302 = pneg %p86
        %p303 = pneg %p83
        %p304 = pneg %p107
        %p305 = pneg %p104
        %p306 = pneg %p128
        %p307 = pneg %p125
        %p308 = pneg %p149
        %p309 = pneg %p146
        %p310 = pneg %p170
        %p311 = pneg %p167
        %p312 = pneg %p196
        %p313 = pneg %p193
        %s314 = sand.u32 %s183, 1
        %s315 = scalar_lea.sflag [#allocation9], %s314
        %s316 = sand.u32 %s183, 1
        %s317 = smul.addr %s316, 88
        %s318 = scalar_lea.vmem [#allocation12], %s317
        %p319 = scmp.lt.s32.totalorder %s39, 1
        %s320 = scalar_select %p319, %s39, 1
        %s321 = smul.addr %s320, 11
        %s322 = smul.addr %s321, 8
        %s323 = scalar_lea.vmem %s2, %s322
        %s324 = sld [smem:[#allocation5 + %s39]]
        %v325 = vld [vmem:[%s323] sm:$0xff]
        %v326 = vld [vmem:[%s323 + $0x8] sm:$0xff]
        %v327 = vld [vmem:[%s323 + $0x10] sm:$0xff]
        %v328 = vld [vmem:[%s323 + $0x18] sm:$0xff]
        %v329 = vld [vmem:[%s323 + $0x20] sm:$0xff]
        %v330 = vld [vmem:[%s323 + $0x28] sm:$0xff]
        %v331 = vld [vmem:[%s323 + $0x30] sm:$0xff]
        %v332 = vld [vmem:[%s323 + $0x38] sm:$0xff]
        %v333 = vld [vmem:[%s323 + $0x40] sm:$0xff]
        %v334 = vld [vmem:[%s323 + $0x48] sm:$0xff]
        %v335 = vld [vmem:[%s323 + $0x50] sm:$0xff]
        %336 = vst [vmem:[#allocation2] sm:$0xff] %v325
        %337 = vst [vmem:[#allocation2 + $0x8] sm:$0xff] %v326
        %338 = vst [vmem:[#allocation2 + $0x10] sm:$0xff] %v327
        %339 = vst [vmem:[#allocation2 + $0x18] sm:$0xff] %v328
        %340 = vst [vmem:[#allocation2 + $0x20] sm:$0xff] %v329
        %341 = vst [vmem:[#allocation2 + $0x28] sm:$0xff] %v330
        %342 = vst [vmem:[#allocation2 + $0x30] sm:$0xff] %v331
        %343 = vst [vmem:[#allocation2 + $0x38] sm:$0xff] %v332
        %344 = vst [vmem:[#allocation2 + $0x40] sm:$0xff] %v333
        %345 = vst [vmem:[#allocation2 + $0x48] sm:$0xff] %v334
        %346 = vst [vmem:[#allocation2 + $0x50] sm:$0xff] %v335
        %v347 = vlaneseq
        %v348 = vand.u32 %v347, 127
        loop: start=0, step=1, limit=8
        $region53: #{tpu_custom_call.1} parent=43 // loop_pre_header
          _
        $region54: #{tpu_custom_call.1} parent=43 // loop_header
          %s350 = sphi 0, %s354
          %p351 = scmp.ge.s32.totalorder %s350, 8
        $region55: #{tpu_custom_call.1} parent=43 // loop_header_branch
          %353 = sbr.rel (%p351) target = $region59
        $region56: #{tpu_custom_call.1} parent=43 // loop_body
          %v355 = vld [vmem:[%s5] sm:$0xff]
          %v356 = vld [vmem:[%s5 + $0x8] sm:$0xff]
          %v357 = vld [vmem:[%s5 + $0x10] sm:$0xff]
          %v358 = vld [vmem:[%s5 + $0x18] sm:$0xff]
          %v359 = vld [vmem:[#allocation2] sm:$0xff]
          %v360 = vld [vmem:[#allocation2 + $0x8] sm:$0xff]
          %v361 = vld [vmem:[#allocation2 + $0x10] sm:$0xff]
          %v362 = vld [vmem:[#allocation2 + $0x18] sm:$0xff]
          %v363 = vld [vmem:[#allocation2 + $0x20] sm:$0xff]
          %v364 = vld [vmem:[#allocation2 + $0x28] sm:$0xff]
          %v365 = vld [vmem:[#allocation2 + $0x30] sm:$0xff]
          %v366 = vld [vmem:[#allocation2 + $0x38] sm:$0xff]
          %v367 = vld [vmem:[#allocation2 + $0x40] sm:$0xff]
          %v368 = vld [vmem:[#allocation2 + $0x48] sm:$0xff]
          %v369 = vld [vmem:[#allocation2 + $0x50] sm:$0xff]
          %vm370 = vcmask 719872
          %v372 = vsel %vm370, %v355, 0
          %v375 = vsel %vm370, %v356, 0
          %v378 = vsel %vm370, %v357, 0
          %v381 = vsel %vm370, %v358, 0
          %383 = vmatpush.msra.mxu0 0.0
          %384 = vmatpush.msra.mxu0 0.0
          %385 = vmatpush.msra.mxu0 0.0
          %386 = vmatpush.msra.mxu0 0.0
          %387 = vmatpush.msra.mxu0 0.0
          %388 = vmatpush.msra.mxu0 %v369
          %389 = vmatpush.msra.mxu0 %v368
          %390 = vmatpush.msra.mxu0 %v367
          %391 = vmatpush.msra.mxu0 %v366
          %392 = vmatpush.msra.mxu0 %v365
          %393 = vmatpush.msra.mxu0 %v364
          %394 = vmatpush.msra.mxu0 %v363
          %395 = vmatpush.msra.mxu0 %v362
          %396 = vmatpush.msra.mxu0 %v361
          %397 = vmatpush.msra.mxu0 %v360
          %398 = vmatpush.msra.mxu0 %v359
          %399 = vmatmul.f32.gmra.mxu0 %v372
          %v400 = vpop.f32.mrf.mxu0
          %v401 = vadd.f32 0.0, %v400
          %402 = vmatmul.f32.gmra.mxu0 %v375
          %v403 = vpop.f32.mrf.mxu0
          %v404 = vadd.f32 0.0, %v403
          %405 = vmatmul.f32.gmra.mxu0 %v378
          %v406 = vpop.f32.mrf.mxu0
          %v407 = vadd.f32 0.0, %v406
          %408 = vmatmul.f32.gmra.mxu0 %v381
          %v409 = vpop.f32.mrf.mxu0
          %v410 = vadd.f32 0.0, %v409
          %411 = vdwg.mxu0
          %412 = vst [vmem:[#allocation3] sm:$0xff] %v401
          %413 = vst [vmem:[#allocation3 + $0x8] sm:$0xff] %v404
          %414 = vst [vmem:[#allocation3 + $0x10] sm:$0xff] %v407
          %415 = vst [vmem:[#allocation3 + $0x18] sm:$0xff] %v410
          // While loop
          $region60: #{tpu_custom_call.1} parent=56 // loop_pre_header
            _
          $region61: #{tpu_custom_call.1} parent=56 // loop_header
            %s417 = sphi 0, %s419
            %p418 = scmp.ge.s32.totalorder %s417, %s324
          $region62: #{tpu_custom_call.1} parent=56 // loop_header_branch
            %421 = sbr.rel (%p418) target = $region66
          $region63: #{tpu_custom_call.1} parent=56 // loop_body
            %s422 = sshra.s32 %s417, 7
            %s423 = sand.u32 %s417, 127
            %s424 = sadd.s32 %s422, %s39
            %s425 = smul.u32 %s424, 128
            %s426 = sshra.s32 %s417, 7
            %s427 = sand.u32 %s417, 127
            %s428 = sadd.s32 %s425, %s427
            %s429 = sld [smem:[#allocation6 + %s428]]
            %s430 = scalar_lea.vmem %s4, %s429
            %v431 = vld [vmem:[%s430] sm:$0x1]
            %s432 = scalar_lea.vmem [#allocation2], %s429
            %v433 = vld [vmem:[%s432] sm:$0x1]
            %s434 = scalar_lea.vmem %s279, %s429 [#allocation7]
            %v435 = vld [vmem:[%s434] sm:$0x1]
            %s436 = scalar_lea.vmem %s6, %s429
            %v437 = vld [vmem:[%s436] sm:$0x1]
            %v438 = vld [vmem:[#allocation3] sm:$0xff]
            %v439 = vld [vmem:[#allocation3 + $0x8] sm:$0xff]
            %v440 = vld [vmem:[#allocation3 + $0x10] sm:$0xff]
            %v441 = vld [vmem:[#allocation3 + $0x18] sm:$0xff]
            %vm442 = vcmask 261120
            %v444 = vsel %vm442, %v431, 0
            %446 = vmatpush.msra.mxu0 0.0
            %447 = vmatpush.msra.mxu0 0.0
            %448 = vmatpush.msra.mxu0 0.0
            %449 = vmatpush.msra.mxu0 0.0
            %450 = vmatpush.msra.mxu0 0.0
            %451 = vmatpush.msra.mxu0 0.0
            %452 = vmatpush.msra.mxu0 0.0
            %453 = vmatpush.msra.mxu0 0.0
            %454 = vmatpush.msra.mxu0 0.0
            %455 = vmatpush.msra.mxu0 0.0
            %456 = vmatpush.msra.mxu0 0.0
            %457 = vmatpush.msra.mxu0 0.0
            %458 = vmatpush.msra.mxu0 %v441
            %459 = vmatpush.msra.mxu0 %v440
            %460 = vmatpush.msra.mxu0 %v439
            %461 = vmatpush.msra.mxu0 %v438
            %462 = vmatmul.f32.gmra.mxu0 %v444
            %v463 = vpop.f32.mrf.mxu0
            %v464 = vadd.f32 0.0, %v463
            %465 = vdwg.mxu0
            %467 = vset.pattern.permute.xlu0 0
            %468 = vperm.xlu0 %467, %v437
            %v469 = vpop.permute.xlu0 %468
            %v471 = vmul.f32 %v469, %v433
            %v472 = vsub.f32 %v464, %v471
            %v473 = vmul.f32 %v472, %v472
            %474 = vrot.lane.b32.xlu0 %v473, 8
            %v475 = vpop.permute.xlu0 %474
            %v476 = vadd.f32 %v473, %v475
            %477 = vrot.lane.b32.xlu0 %v476, 16
            %v478 = vpop.permute.xlu0 %477
            %v479 = vadd.f32 %v476, %v478
            %480 = vrot.lane.b32.xlu0 %v479, 32
            %v481 = vpop.permute.xlu0 %480
            %v482 = vadd.f32 %v479, %v481
            %483 = vrot.lane.b32.xlu0 %v482, 64
            %v484 = vpop.permute.xlu0 %483
            %v485 = vadd.f32 %v482, %v484
            %v486 = vsub.f32 0.0, %v472
            %v487 = vmax.f32 %v485, 1e-12
            %v488 = vrsqrt.pop %v487
            %v489 = vmul.f32 %v488, %v487
            %v490 = vmul.f32 %v489, %v488
            %v491 = vmul.f32 0.5, %v490
            %v492 = vsub.f32 1.5, %v491
            %v493 = vmul.f32 %v488, %v492
            %vm494 = vweird.f32 %v487
            %vm495 = vweird.f32 %v488
            %vm496 = vmor %vm494, %vm495
            %v497 = vsel %vm496, %v488, %v493
            %v498 = vmul.f32 %v486, %v497
            %vm499 = vcmp.gt.f32.partialorder %v485, 1e-12
            %v500 = vsel %vm499, %v498, %v433
            %v501 = vsub.f32 %v500, %v433
            %v502 = vmul.f32 %v435, %v501
            %v503 = vadd.f32 %v433, %v502
            %504 = vst [vmem:[%s432] sm:$0x1] %v503
            %v505 = vstv %s429
            %vm506 = vcmp.eq.s32.totalorder %v348, %v505
            %v507 = vsel %vm506, 1, 0
            %v508 = vcvt.s32.f32 %v507
            %v509 = vld [vmem:[%s5] sm:$0xff]
            %v510 = vld [vmem:[%s5 + $0x8] sm:$0xff]
            %v511 = vld [vmem:[%s5 + $0x10] sm:$0xff]
            %v512 = vld [vmem:[%s5 + $0x18] sm:$0xff]
            %v513 = vmul.f32 %v509, %v508
            %v514 = vmul.f32 %v510, %v508
            %v515 = vmul.f32 %v511, %v508
            %v516 = vmul.f32 %v512, %v508
            %v517 = vsel %vm370, %v513, 0.0
            %518 = vadd.xlane.f32.xlu0 %v517
            %v519 = vpop.xlane.xlu0 %518
            %v520 = vsel %vm370, %v514, 0.0
            %521 = vadd.xlane.f32.xlu0 %v520
            %v522 = vpop.xlane.xlu0 %521
            %v523 = vsel %vm370, %v515, 0.0
            %524 = vadd.xlane.f32.xlu0 %v523
            %v525 = vpop.xlane.xlu0 %524
            %v526 = vsel %vm370, %v516, 0.0
            %527 = vadd.xlane.f32.xlu0 %v526
            %v528 = vpop.xlane.xlu0 %527
            %v529 = vld [vmem:[#allocation3] sm:$0xff]
            %v530 = vld [vmem:[#allocation3 + $0x8] sm:$0xff]
            %v531 = vld [vmem:[#allocation3 + $0x10] sm:$0xff]
            %v532 = vld [vmem:[#allocation3 + $0x18] sm:$0xff]
            %v533 = vperm.slane %v502, 0
            %v534 = vmul.f32 %v519, %v533
            %v535 = vmul.f32 %v522, %v533
            %v536 = vmul.f32 %v525, %v533
            %v537 = vmul.f32 %v528, %v533
            %v538 = vadd.f32 %v529, %v534
            %v539 = vadd.f32 %v530, %v535
            %v540 = vadd.f32 %v531, %v536
            %v541 = vadd.f32 %v532, %v537
            %542 = vst [vmem:[#allocation3] sm:$0xff] %v538
            %543 = vst [vmem:[#allocation3 + $0x8] sm:$0xff] %v539
            %544 = vst [vmem:[#allocation3 + $0x10] sm:$0xff] %v540
            %545 = vst [vmem:[#allocation3 + $0x18] sm:$0xff] %v541
          $region64: #{tpu_custom_call.1} parent=56 // loop_footer
            %s419 = sadd.s32 %s417, 1
          $region65: #{tpu_custom_call.1} parent=56 // loop_footer_branch
            %416 = sbr.rel target = $region61
          $region66: #{tpu_custom_call.1} parent=56 // loop_exit
            _
        $region57: #{tpu_custom_call.1} parent=43 // loop_footer
          %s354 = sadd.s32 1, %s350
        $region58: #{tpu_custom_call.1} parent=43 // loop_footer_branch
          %349 = sbr.rel target = $region54
        $region59: #{tpu_custom_call.1} parent=43 // loop_exit
          _
        %v546 = vld [vmem:[#allocation2] sm:$0xff]
        %v547 = vld [vmem:[#allocation2 + $0x8] sm:$0xff]
        %v548 = vld [vmem:[#allocation2 + $0x10] sm:$0xff]
        %v549 = vld [vmem:[#allocation2 + $0x18] sm:$0xff]
        %v550 = vld [vmem:[#allocation2 + $0x20] sm:$0xff]
        %v551 = vld [vmem:[#allocation2 + $0x28] sm:$0xff]
        %v552 = vld [vmem:[#allocation2 + $0x30] sm:$0xff]
        %v553 = vld [vmem:[#allocation2 + $0x38] sm:$0xff]
        %v554 = vld [vmem:[#allocation2 + $0x40] sm:$0xff]
        %v555 = vld [vmem:[#allocation2 + $0x48] sm:$0xff]
        %v556 = vld [vmem:[#allocation2 + $0x50] sm:$0xff]
        %v557 = vld [vmem:[#allocation2] sm:$0x1]
        %v558 = vperm.slane %v557, 0
        %v559 = vmul.f32 %v546, %v558
        %v560 = vmul.f32 %v547, %v558
        %v561 = vmul.f32 %v548, %v558
        %v562 = vmul.f32 %v549, %v558
        %v563 = vmul.f32 %v550, %v558
        %v564 = vmul.f32 %v551, %v558
        %v565 = vmul.f32 %v552, %v558
        %v566 = vmul.f32 %v553, %v558
        %v567 = vmul.f32 %v554, %v558
        %v568 = vmul.f32 %v555, %v558
        %v569 = vmul.f32 %v556, %v558
        %v570 = vld [vmem:[#allocation10] sm:$0xff]
        %v571 = vld [vmem:[#allocation10 + $0x8] sm:$0xff]
        %v572 = vld [vmem:[#allocation10 + $0x10] sm:$0xff]
        %v573 = vld [vmem:[#allocation10 + $0x18] sm:$0xff]
        %v574 = vld [vmem:[#allocation10 + $0x20] sm:$0xff]
        %v575 = vld [vmem:[#allocation10 + $0x28] sm:$0xff]
        %v576 = vld [vmem:[#allocation10 + $0x30] sm:$0xff]
        %v577 = vld [vmem:[#allocation10 + $0x38] sm:$0xff]
        %v578 = vld [vmem:[#allocation10 + $0x40] sm:$0xff]
        %v579 = vld [vmem:[#allocation10 + $0x48] sm:$0xff]
        %v580 = vld [vmem:[#allocation10 + $0x50] sm:$0xff]
        %v581 = vld [vmem:[#allocation10 + $0x58] sm:$0xff]
        %v582 = vld [vmem:[#allocation10 + $0x60] sm:$0xff]
        %v583 = vld [vmem:[#allocation10 + $0x68] sm:$0xff]
        %v584 = vld [vmem:[#allocation10 + $0x70] sm:$0xff]
        %v585 = vld [vmem:[#allocation10 + $0x78] sm:$0xff]
        %586 = vmatpush.msra.mxu0 %v585
        %587 = vmatpush.msra.mxu0 %v584
        %588 = vmatpush.msra.mxu0 %v583
        %589 = vmatpush.msra.mxu0 %v582
        %590 = vmatpush.msra.mxu0 %v581
        %591 = vmatpush.msra.mxu0 %v580
        %592 = vmatpush.msra.mxu0 %v579
        %593 = vmatpush.msra.mxu0 %v578
        %594 = vmatpush.msra.mxu0 %v577
        %595 = vmatpush.msra.mxu0 %v576
        %596 = vmatpush.msra.mxu0 %v575
        %597 = vmatpush.msra.mxu0 %v574
        %598 = vmatpush.msra.mxu0 %v573
        %599 = vmatpush.msra.mxu0 %v572
        %600 = vmatpush.msra.mxu0 %v571
        %601 = vmatpush.msra.mxu0 %v570
        %602 = vmatmul.f32.gmra.mxu0 %v559
        %v603 = vpop.f32.mrf.mxu0
        %v604 = vadd.f32 0.0, %v603
        %605 = vmatmul.f32.gmra.mxu0 %v560
        %v606 = vpop.f32.mrf.mxu0
        %v607 = vadd.f32 0.0, %v606
        %608 = vmatmul.f32.gmra.mxu0 %v561
        %v609 = vpop.f32.mrf.mxu0
        %v610 = vadd.f32 0.0, %v609
        %611 = vmatmul.f32.gmra.mxu0 %v562
        %v612 = vpop.f32.mrf.mxu0
        %v613 = vadd.f32 0.0, %v612
        %614 = vmatmul.f32.gmra.mxu0 %v563
        %v615 = vpop.f32.mrf.mxu0
        %v616 = vadd.f32 0.0, %v615
        %617 = vmatmul.f32.gmra.mxu0 %v564
        %v618 = vpop.f32.mrf.mxu0
        %v619 = vadd.f32 0.0, %v618
        %620 = vmatmul.f32.gmra.mxu0 %v565
        %v621 = vpop.f32.mrf.mxu0
        %v622 = vadd.f32 0.0, %v621
        %623 = vmatmul.f32.gmra.mxu0 %v566
        %v624 = vpop.f32.mrf.mxu0
        %v625 = vadd.f32 0.0, %v624
        %626 = vmatmul.f32.gmra.mxu0 %v567
        %v627 = vpop.f32.mrf.mxu0
        %v628 = vadd.f32 0.0, %v627
        %629 = vmatmul.f32.gmra.mxu0 %v568
        %v630 = vpop.f32.mrf.mxu0
        %v631 = vadd.f32 0.0, %v630
        %632 = vmatmul.f32.gmra.mxu0 %v569
        %v633 = vpop.f32.mrf.mxu0
        %v634 = vadd.f32 0.0, %v633
        %635 = vdwg.mxu0
        %v636 = vsub.f32 0.0, %v604
        %v637 = vsub.f32 0.0, %v607
        %v638 = vsub.f32 0.0, %v610
        %v639 = vsub.f32 0.0, %v613
        %v640 = vsub.f32 0.0, %v616
        %v641 = vsub.f32 0.0, %v619
        %v642 = vsub.f32 0.0, %v622
        %v643 = vsub.f32 0.0, %v625
        %v644 = vsub.f32 0.0, %v628
        %v645 = vsub.f32 0.0, %v631
        %v646 = vsub.f32 0.0, %v634
        %647 = vst [vmem:[%s318] sm:$0xff] %v636
        %648 = vst [vmem:[%s318 + $0x8] sm:$0xff] %v637
        %649 = vst [vmem:[%s318 + $0x10] sm:$0xff] %v638
        %650 = vst [vmem:[%s318 + $0x18] sm:$0xff] %v639
        %651 = vst [vmem:[%s318 + $0x20] sm:$0xff] %v640
        %652 = vst [vmem:[%s318 + $0x28] sm:$0xff] %v641
        %653 = vst [vmem:[%s318 + $0x30] sm:$0xff] %v642
        %654 = vst [vmem:[%s318 + $0x38] sm:$0xff] %v643
        %655 = vst [vmem:[%s318 + $0x40] sm:$0xff] %v644
        %656 = vst [vmem:[%s318 + $0x48] sm:$0xff] %v645
        %657 = vst [vmem:[%s318 + $0x50] sm:$0xff] %v646
        %s658 = sand.u32 %s183, 1
        %s659 = scalar_lea.sflag [#allocation9], %s658
        %s660 = sand.u32 %s183, 1
        %s661 = smul.addr %s660, 88
        %s662 = scalar_lea.vmem [#allocation12], %s661
        // Predicated region
        $region67: #{tpu_custom_call.1} parent=43 // pred_check
          %p663 = pneg %p193
        $region68: #{tpu_custom_call.1} parent=43 // pred_check_branch
          %665 = sbr.rel (%p663) target = $region70
        $region69: #{tpu_custom_call.1} parent=43 // pred_region
          %667 = vsyncadd %s659, 0
          %s668 = smul.addr %s39, 11
          %s669 = smul.addr %s668, 8
          %s670 = scalar_lea.hbm %s8, %s669
          %s671 = sshll.u32 %s662, 4
          %s672 = int_to_ptr.vmem [resolvable:$true] %s671
          %s673 = sshll.u32 %s670, 4
          %s674 = int_to_ptr.hbm [resolvable:$true] %s673
          %679 = dma.vmem_to_hbm [thread:$0]  %s672, 1408, %s674, %s659, 128, 128, 8
        $region70: #{tpu_custom_call.1} parent=43 // pred_fallthru
          _
      $region44: #{tpu_custom_call.1} parent=5 // pred_fallthru
        _
      %p680 = scmp.le.s32.totalorder 2, %s34
      // Predicated region
      $region71: #{tpu_custom_call.1} parent=5 // pred_check
        %p681 = pneg %p680
      $region72: #{tpu_custom_call.1} parent=5 // pred_check_branch
        %683 = sbr.rel (%p681) target = $region74
      $region73: #{tpu_custom_call.1} parent=5 // pred_region
        %s684 = ssub.s32 %s34, 2
        // Predicated region
        $region75: #{tpu_custom_call.1} parent=73 // pred_check
          %p685 = pneg %p199
        $region76: #{tpu_custom_call.1} parent=73 // pred_check_branch
          %687 = sbr.rel (%p685) target = $region78
        $region77: #{tpu_custom_call.1} parent=73 // pred_region
          %s688 = sand.u32 %s184, 1
          %s689 = scalar_lea.sflag [#allocation9], %s688
          %s690 = sand.u32 %s184, 1
          %s691 = smul.addr %s690, 88
          %s692 = scalar_lea.vmem [#allocation12], %s691
          %694 = dma.done %s689, 1408
        $region78: #{tpu_custom_call.1} parent=73 // pred_fallthru
          _
      $region74: #{tpu_custom_call.1} parent=5 // pred_fallthru
        _
    $region6: #{tpu_custom_call.1} parent=1 // loop_footer
      %s38 = sadd.s32 1, %s34
    $region7: #{tpu_custom_call.1} parent=1 // loop_footer_branch
      %33 = sbr.rel target = $region3
    $region8: #{tpu_custom_call.1} parent=1 // loop_exit
      _
    %695 = vsyncpa [#allocation8], 1
    %s696 = scalar_lea.sflag [#allocation8], 1
    %697 = vsyncpa %s696, 1
    %698 = vsyncpa [#allocation11], 1
    %699 = vsyncpa [#allocation9], 1
    %s700 = scalar_lea.sflag [#allocation9], 1
    %701 = vsyncpa %s700, 1

</llo_original>
